<compile_context>
chip_gen: v7x
topology: tpu7x:2x2x1
jax: 0.10.0
libtpu: 0.0.40
codegen_flags: <defaults>
</compile_context>

<pallas_src>
import math
from functools import partial

import numpy as np
import jax
import jax.numpy as jnp
from jax.experimental import pallas as pl
from jax.experimental.pallas import tpu as pltpu


# ----------------------------------------------------------------------------
# Padding helpers (applied ONCE at init time for weights / biases).
# ----------------------------------------------------------------------------
def _round_up(v, m):
    return (v + m - 1) // m * m


def _pad_matrix_bf16(w):
    """[K, N] f32 -> padded [Kp, Np] bf16 (Kp, Np multiples of 128)."""
    K, N = w.shape
    Kp = _round_up(max(K, 128), 128)
    Np = _round_up(max(N, 128), 128)
    return jnp.zeros((Kp, Np), jnp.bfloat16).at[:K, :N].set(w.astype(jnp.bfloat16))


def _pad_bias_f32(b):
    """[N] f32 -> padded [1, Np] f32."""
    N = b.shape[0]
    Np = _round_up(max(N, 128), 128)
    return jnp.zeros((1, Np), jnp.float32).at[0, :N].set(b.astype(jnp.float32))


_VMEM_SPEC = pl.BlockSpec(memory_space=pltpu.MemorySpace.VMEM)


# ----------------------------------------------------------------------------
# Pallas kernel 1: fused (matmul + bias [+ relu]), single whole-block step.
# a: bf16 [Mp, Kp], w: bf16 [Kp, Np], bias: f32 [1, Np], out: f32 [Mp, Np].
# ----------------------------------------------------------------------------
def _linear_kernel(a_ref, w_ref, b_ref, o_ref, *, relu):
    acc = jnp.dot(a_ref[...], w_ref[...], preferred_element_type=jnp.float32)
    acc = acc + b_ref[...]
    if relu:
        acc = jnp.maximum(acc, 0.0)
    o_ref[...] = acc


def pallas_linear_pp(x, w_padded, b_padded, n_out, relu=False):
    """y = x @ W + b using PRE-padded bf16 W and f32 bias. x: [M, K] f32."""
    M, K = x.shape
    Kp, Np = w_padded.shape
    assert K <= Kp and n_out <= Np
    Mp = _round_up(max(M, 16), 16)
    xp = jnp.zeros((Mp, Kp), jnp.bfloat16).at[:M, :K].set(x.astype(jnp.bfloat16))

    out = pl.pallas_call(
        partial(_linear_kernel, relu=relu),
        out_shape=jax.ShapeDtypeStruct((Mp, Np), jnp.float32),
        in_specs=[_VMEM_SPEC, _VMEM_SPEC, _VMEM_SPEC],
        out_specs=_VMEM_SPEC,
    )(xp, w_padded, b_padded)
    return out[:M, :n_out]


# ----------------------------------------------------------------------------
# Pallas kernel 2: fused classifier head (lin1+relu -> lin2+relu -> lin3).
# All intermediates stay in VMEM / vregs; single launch.
# ----------------------------------------------------------------------------
def _head_kernel(h_ref, w1_ref, b1_ref, w2_ref, b2_ref, w3_ref, b3_ref, o_ref):
    h1 = jnp.dot(h_ref[...], w1_ref[...], preferred_element_type=jnp.float32)
    h1 = jnp.maximum(h1 + b1_ref[...], 0.0)
    h2 = jnp.dot(h1.astype(jnp.bfloat16), w2_ref[...],
                 preferred_element_type=jnp.float32)
    h2 = jnp.maximum(h2 + b2_ref[...], 0.0)
    # TODO(synk): F.dropout(p=0.2) between lin1/lin2 omitted (eval-mode identity).
    o_ref[...] = jnp.dot(h2.astype(jnp.bfloat16), w3_ref[...],
                         preferred_element_type=jnp.float32) + b3_ref[...]


def classifier_head(hp, h, n_classes=2):
    B, D = h.shape                       # D = 1024 (already a multiple of 128)
    Bp = _round_up(max(B, 16), 16)
    hpad = jnp.zeros((Bp, D), jnp.bfloat16).at[:B, :].set(h.astype(jnp.bfloat16))
    out = pl.pallas_call(
        _head_kernel,
        out_shape=jax.ShapeDtypeStruct((Bp, hp["W3p"].shape[1]), jnp.float32),
        in_specs=[_VMEM_SPEC] * 7,
        out_specs=_VMEM_SPEC,
    )(hpad, hp["W1p"], hp["b1p"], hp["W2p"], hp["b2p"], hp["W3p"], hp["b3p"])
    return out[:B, :n_classes]


# ----------------------------------------------------------------------------
# GATv2Conv (heads=H, concat=False, add_self_loops=True, negative_slope=0.2).
# Both projections fused into one Pallas matmul (Wl|Wr).
# TODO(synk): the gather / segment-softmax message passing stays in XLA; a
# scalar-prefetch Pallas kernel keeping xl/xr resident in VMEM is the next step.
# ----------------------------------------------------------------------------
def gatv2_conv(x, src, dst, emask, p):
    N = x.shape[0]
    H, C = p["heads"], p["out"]

    xlr = pallas_linear_pp(x, p["W_lr_p"], p["b_lr_p"], 2 * H * C)   # [N, 2*H*C]
    xl = xlr[:, : H * C].reshape(N, H, C)                            # lin_l
    xr = xlr[:, H * C:].reshape(N, H, C)                             # lin_r

    # remove_self_loops is a no-op (input graph has none); add self loops.
    loop = jnp.arange(N, dtype=jnp.int32)
    s = jnp.concatenate([src, loop])
    d = jnp.concatenate([dst, loop])
    m = jnp.concatenate([emask, jnp.ones((N,), dtype=bool)])

    e = xl[s] + xr[d]                                   # [E+N, H, C]
    e = jnp.where(e > 0, e, 0.2 * e)                    # LeakyReLU(0.2)
    logits = jnp.sum(e * p["att"][None], axis=-1)       # [E+N, H]

    seg = jnp.where(m, d, N)                            # invalid edges -> dummy seg
    smax = jax.ops.segment_max(logits, seg, num_segments=N + 1)
    alpha = jnp.exp(logits - smax[seg])
    alpha = jnp.where(m[:, None], alpha, 0.0)
    denom = jax.ops.segment_sum(alpha, seg, num_segments=N + 1)
    alpha = alpha / jnp.maximum(denom[seg], 1e-16)

    msg = xl[s] * alpha[:, :, None]
    out = jax.ops.segment_sum(msg, seg, num_segments=N + 1)[:N]  # [N, H, C]
    out = out.mean(axis=1) + p["bias"][None, :]                  # concat=False
    return out


# ----------------------------------------------------------------------------
# SAGPooling(512, 0.7): GraphConv(512, 1) scorer + tanh + per-graph top-k.
# ----------------------------------------------------------------------------
def _graphconv_score(x, src, dst, emask, p):
    N = x.shape[0]
    seg = jnp.where(emask, dst, N)
    agg = jax.ops.segment_sum(x[src] * emask[:, None].astype(x.dtype),
                              seg, num_segments=N + 1)[:N]
    # Fused scorer: [agg | x] @ [W_rel ; W_root] + b_rel. Output width is 1, so
    # a plain jnp.dot beats a 128-padded Pallas matvec here.
    s = jnp.dot(jnp.concatenate([agg, x], axis=1), p["W_score"]) + p["b_rel"]
    return s[:, 0]


def sag_pool(x, src, dst, emask, counts, p, ratio=0.7):
    N = x.shape[0]
    score = jnp.tanh(_graphconv_score(x, src, dst, emask, p))

    perms, new_counts = [], []
    off = 0
    for n in counts:
        k = int(math.ceil(float(np.float32(ratio)) * n))   # matches torch ceil(ratio*n)
        idx = jnp.argsort(-score[off:off + n])[:k] + off
        perms.append(idx)
        new_counts.append(k)
        off += n
    perm = jnp.concatenate(perms)

    new_x = x[perm] * score[perm][:, None]
    Nn = sum(new_counts)
    node_map = jnp.full((N,), -1, jnp.int32).at[perm].set(
        jnp.arange(Nn, dtype=jnp.int32))
    ns, nd = node_map[src], node_map[dst]
    nmask = emask & (ns >= 0) & (nd >= 0)
    ns = jnp.where(nmask, ns, 0)
    nd = jnp.where(nmask, nd, 0)
    return new_x, ns, nd, nmask, new_counts


def global_pools(x, counts):
    """[gmp(x,batch) || gap(x,batch)] -> [num_graphs, 2*F]."""
    mx, mn = [], []
    off = 0
    for n in counts:
        xg = x[off:off + n]
        mx.append(xg.max(axis=0))
        mn.append(xg.mean(axis=0))
        off += n
    return jnp.concatenate([jnp.stack(mx), jnp.stack(mn)], axis=1)


# ----------------------------------------------------------------------------
# Full MUSTANG_Classifier forward.
# ----------------------------------------------------------------------------
def mustang_forward(params, x, src, dst, emask, counts, label):
    pooled = []
    for i in range(4):
        x = gatv2_conv(x, src, dst, emask, params["gat"][i])
        x = jnp.maximum(x, 0.0)                                   # F.relu
        x, src, dst, emask, counts = sag_pool(x, src, dst, emask, counts,
                                              params["pool"][i])
        pooled.append(global_pools(x, counts))

    h = pooled[0] + pooled[1] + pooled[2] + pooled[3]             # x1+x2+x3+x4
    logits = classifier_head(params["head"], h)                   # fused lin1/2/3
    probs = jax.nn.softmax(logits, axis=1)
    return logits, probs, label


# ----------------------------------------------------------------------------
# Deterministic parameter init (shapes from MUSTANG_Classifier.__init__).
# Weights are fused, padded and cast to bf16 ONCE here.
# ----------------------------------------------------------------------------
def init_params(key, in_features, hidden=512, heads=2):
    keys = iter(jax.random.split(key, 64))

    def glorot(shape):
        lim = math.sqrt(6.0 / (shape[0] + shape[1]))
        return jax.random.uniform(next(keys), shape, jnp.float32, -lim, lim)

    gat, pool = [], []
    fin = in_features
    for _ in range(4):
        Wl = glorot((fin, heads * hidden))
        Wr = glorot((fin, heads * hidden))
        bl = jnp.zeros((heads * hidden,), jnp.float32)
        br = jnp.zeros((heads * hidden,), jnp.float32)
        gat.append(dict(
            heads=heads, out=hidden,
            W_lr_p=_pad_matrix_bf16(jnp.concatenate([Wl, Wr], axis=1)),
            b_lr_p=_pad_bias_f32(jnp.concatenate([bl, br])),
            att=glorot((heads, hidden)),
            bias=jnp.zeros((hidden,), jnp.float32)))

        W_rel = glorot((hidden, 1))
        W_root = glorot((hidden, 1))
        pool.append(dict(
            W_score=jnp.concatenate([W_rel, W_root], axis=0),    # [2*hidden, 1]
            b_rel=jnp.zeros((1,), jnp.float32)))
        fin = hidden

    W1 = glorot((2 * hidden, hidden)); b1 = jnp.zeros((hidden,), jnp.float32)
    W2 = glorot((hidden, hidden // 2)); b2 = jnp.zeros((hidden // 2,), jnp.float32)
    W3 = glorot((hidden // 2, 2)); b3 = jnp.zeros((2,), jnp.float32)
    head = dict(W1p=_pad_matrix_bf16(W1), b1p=_pad_bias_f32(b1),
                W2p=_pad_matrix_bf16(W2), b2p=_pad_bias_f32(b2),
                W3p=_pad_matrix_bf16(W3), b3p=_pad_bias_f32(b3))

    return dict(gat=gat, pool=pool, head=head)


def make_graph(counts):
    """Deterministic ring-ish graphs (no self loops), per-graph node blocks."""
    srcs, dsts = [], []
    off = 0
    for n in counts:
        for i in range(n):
            for d in (1, 2, 3):
                j = (i + d) % n
                if j != i:
                    srcs += [off + i, off + j]
                    dsts += [off + j, off + i]
        off += n
    src = jnp.asarray(np.array(srcs, dtype=np.int32))
    dst = jnp.asarray(np.array(dsts, dtype=np.int32))
    mask = jnp.ones((src.shape[0],), dtype=bool)
    return src, dst, mask


if __name__ == "__main__":
    in_features = 64
    counts = [14, 10]                 # two graphs in the batch
    N = sum(counts)

    key = jax.random.PRNGKey(0)
    kx, kp = jax.random.split(key)
    x = jax.random.normal(kx, (N, in_features), dtype=jnp.float32)
    src, dst, emask = make_graph(counts)
    label = jnp.array([0, 1], dtype=jnp.int32)

    params = init_params(kp, in_features, hidden=512, heads=2)

    logits, probs, label_out = mustang_forward(params, x, src, dst, emask,
                                               counts, label)
    logits, probs, label_out = jax.block_until_ready((logits, probs, label_out))

    assert logits.shape == (len(counts), 2)
    assert probs.shape == (len(counts), 2)
    assert bool(jnp.all(jnp.isfinite(logits)))
    assert bool(jnp.all(jnp.isfinite(probs)))
    assert bool(jnp.all(jnp.abs(probs.sum(axis=1) - 1.0) < 1e-5))
    print("KERNEL_OK")
</pallas_src>

<mosaic_0001>
module attributes {stable_mosaic.version = 11 : i64} {
  func.func @_linear_kernel(%arg0: memref<32x128xbf16, #tpu.memory_space<vmem>>, %arg1: memref<128x2048xbf16, #tpu.memory_space<vmem>>, %arg2: memref<1x2048xf32, #tpu.memory_space<vmem>>, %arg3: memref<32x2048xf32, #tpu.memory_space<vmem>>) attributes {dimension_semantics = [], scalar_prefetch = 0 : i64, scratch_operands = 0 : i64, tpu.core_type = #tpu.core_type<tc>} {
    %c0 = arith.constant 0 : index
    %c0_0 = arith.constant 0 : index
    %0 = vector.load %arg0[%c0, %c0_0] : memref<32x128xbf16, #tpu.memory_space<vmem>>, vector<32x128xbf16>
    %c0_1 = arith.constant 0 : index
    %c0_2 = arith.constant 0 : index
    %1 = vector.load %arg1[%c0_1, %c0_2] : memref<128x2048xbf16, #tpu.memory_space<vmem>>, vector<128x2048xbf16>
    %cst = arith.constant dense<0.000000e+00> : vector<32x2048xf32>
    %2 = tpu.matmul %0, %1, %cst {dimension_numbers = #tpu.dot_dimension_numbers<[1], [0], [0], [1], [0, 0, 1, 1], [], []>} : vector<32x128xbf16>, vector<128x2048xbf16>, vector<32x2048xf32> -> vector<32x2048xf32>
    %c0_3 = arith.constant 0 : index
    %c0_4 = arith.constant 0 : index
    %3 = vector.load %arg2[%c0_3, %c0_4] : memref<1x2048xf32, #tpu.memory_space<vmem>>, vector<1x2048xf32>
    %4 = vector.broadcast %3 : vector<1x2048xf32> to vector<32x2048xf32>
    %5 = arith.addf %2, %4 : vector<32x2048xf32>
    %c0_5 = arith.constant 0 : index
    %c0_6 = arith.constant 0 : index
    %6 = vector.load %arg3[%c0_5, %c0_6] : memref<32x2048xf32, #tpu.memory_space<vmem>>, vector<32x2048xf32>
    tpu.vector_store %arg3[%c0_5, %c0_6], %5 {strides = array<i32>} : memref<32x2048xf32, #tpu.memory_space<vmem>>, vector<32x2048xf32>,
    return
  }
}

</mosaic_0001>

<llo_original>
// kernel: tpu_custom_call.1
$region0: #{tpu_custom_call.1}
  #allocation0 [shape = 'u32[]', space=smem, size = 0x4, offset = 0x4, fixed_abs, tag = 'smem constant byte address 0x4 - core index']
  #allocation1 [shape = 'u32[144,128]{1,0:T(1,128)}', space=vmem, size = 0x12000, scoped, tag = 'internal scratch']
  %s0 = inlined_call_operand.hbm [shape: bf16[32,128], index: 0, kind: input, shape index: {}]
  %s1 = inlined_call_operand.hbm [shape: bf16[128,2048], index: 1, kind: input, shape index: {}]
  %s2 = inlined_call_operand.hbm [shape: f32[1,2048], index: 2, kind: input, shape index: {}]
  %s3 = inlined_call_operand.hbm [shape: f32[32,2048], index: 3, kind: output, shape index: {}]
  %s4 = sld [smem:[#allocation0]]
  $region34: #{tpu_custom_call.1} parent=0
    _
  %s6 = ssub.s32 1, %s4
  %s7 = scalar_select 0, %s6, %s4
  $region1: #{tpu_custom_call.1} parent=0
    #allocation2 [shape = 'u8[8192]{0}', space=vmem, size = 0x2000, scoped, tag = 'input window, operand 0, single buffered']
    #allocation3 [shape = 's32[1]{0}', space=sflag, size = 0x4, scoped, tag = 'scoped memory for tpu_custom_call.1']
    #allocation4 [shape = 's32[1]{0}', space=sflag, size = 0x4, scoped, tag = 'scoped memory for tpu_custom_call.1']
    #allocation5 [shape = 'u8[524288]{0}', space=vmem, size = 0x80000, scoped, tag = 'input window, operand 1, single buffered']
    #allocation6 [shape = 's32[1]{0}', space=sflag, size = 0x4, scoped, tag = 'scoped memory for tpu_custom_call.1']
    #allocation7 [shape = 'u8[8192]{0}', space=vmem, size = 0x2000, scoped, tag = 'input window, operand 2, single buffered']
    #allocation8 [shape = 'u8[262144]{0}', space=vmem, size = 0x40000, scoped, tag = 'output window, operand 0, single buffered']
    %8 = vsyncpa [#allocation3], 0
    %9 = vsyncpa [#allocation6], 0
    %10 = vsyncpa [#allocation4], 0
    // Predicated region
    $region2: #{tpu_custom_call.1} parent=1 // pred_check
      _
    $region3: #{tpu_custom_call.1} parent=1 // pred_check_branch
      %12 = sbr.rel (0) target = $region5
    $region4: #{tpu_custom_call.1} parent=1 // pred_region
      %s14 = ssub.s32 256, 256
      %15 = vsyncadd [#allocation3], %s14
      %s16 = sshll.u32 [#allocation2], 4
      %s17 = int_to_ptr.vmem [resolvable:$true] %s16
      %22 = dma.hbm_to_vmem [thread:$0]  %s0, 256, %s17, [#allocation3], 64, 64, 4
    $region5: #{tpu_custom_call.1} parent=1 // pred_fallthru
      _
    // Predicated region
    $region6: #{tpu_custom_call.1} parent=1 // pred_check
      _
    $region7: #{tpu_custom_call.1} parent=1 // pred_check_branch
      %24 = sbr.rel (0) target = $region9
    $region8: #{tpu_custom_call.1} parent=1 // pred_region
      %s26 = ssub.s32 16384, 16384
      %27 = vsyncadd [#allocation6], %s26
      %s28 = sshll.u32 [#allocation5], 4
      %s29 = int_to_ptr.vmem [resolvable:$true] %s28
      %34 = dma.hbm_to_vmem [thread:$0]  %s1, 16384, %s29, [#allocation6], 1024, 1024, 64
    $region9: #{tpu_custom_call.1} parent=1 // pred_fallthru
      _
    // Predicated region
    $region10: #{tpu_custom_call.1} parent=1 // pred_check
      _
    $region11: #{tpu_custom_call.1} parent=1 // pred_check_branch
      %36 = sbr.rel (0) target = $region13
    $region12: #{tpu_custom_call.1} parent=1 // pred_region
      %s38 = ssub.s32 256, 256
      %39 = vsyncadd [#allocation6], %s38
      %s41 = sshll.u32 [#allocation7], 4
      %s42 = int_to_ptr.vmem [resolvable:$true] %s41
      %44 = dma.hbm_to_vmem [thread:$0]  %s2, 256, %s42, [#allocation6]
    $region13: #{tpu_custom_call.1} parent=1 // pred_fallthru
      _
    // Predicated region
    $region14: #{tpu_custom_call.1} parent=1 // pred_check
      _
    $region15: #{tpu_custom_call.1} parent=1 // pred_check_branch
      %46 = sbr.rel (0) target = $region17
    $region16: #{tpu_custom_call.1} parent=1 // pred_region
      %47 = dma.done [#allocation3], 256
    $region17: #{tpu_custom_call.1} parent=1 // pred_fallthru
      _
    // Predicated region
    $region18: #{tpu_custom_call.1} parent=1 // pred_check
      _
    $region19: #{tpu_custom_call.1} parent=1 // pred_check_branch
      %49 = sbr.rel (0) target = $region21
    $region20: #{tpu_custom_call.1} parent=1 // pred_region
      %50 = dma.done [#allocation6], 16384
    $region21: #{tpu_custom_call.1} parent=1 // pred_fallthru
      _
    // Predicated region
    $region22: #{tpu_custom_call.1} parent=1 // pred_check
      _
    $region23: #{tpu_custom_call.1} parent=1 // pred_check_branch
      %52 = sbr.rel (0) target = $region25
    $region24: #{tpu_custom_call.1} parent=1 // pred_region
      %53 = dma.done [#allocation6], 256
    $region25: #{tpu_custom_call.1} parent=1 // pred_fallthru
      _
    %v55 = vld [vmem:[#allocation2] sm:$0xf]
    %v56 = vld [vmem:[#allocation2 + $0x4] sm:$0xf]
    %v57 = vld [vmem:[#allocation2 + $0x8] sm:$0xf]
    %v58 = vld [vmem:[#allocation2 + $0xc] sm:$0xf]
    %v59 = vld [vmem:[#allocation5] sm:$0xff]
    %v60 = vld [vmem:[#allocation5 + $0x8] sm:$0xff]
    %v61 = vld [vmem:[#allocation5 + $0x10] sm:$0xff]
    %v62 = vld [vmem:[#allocation5 + $0x18] sm:$0xff]
    %v63 = vld [vmem:[#allocation5 + $0x20] sm:$0xff]
    %v64 = vld [vmem:[#allocation5 + $0x28] sm:$0xff]
    %v65 = vld [vmem:[#allocation5 + $0x30] sm:$0xff]
    %v66 = vld [vmem:[#allocation5 + $0x38] sm:$0xff]
    %v67 = vld [vmem:[#allocation5 + $0x40] sm:$0xff]
    %v68 = vld [vmem:[#allocation5 + $0x48] sm:$0xff]
    %v69 = vld [vmem:[#allocation5 + $0x50] sm:$0xff]
    %v70 = vld [vmem:[#allocation5 + $0x58] sm:$0xff]
    %v71 = vld [vmem:[#allocation5 + $0x60] sm:$0xff]
    %v72 = vld [vmem:[#allocation5 + $0x68] sm:$0xff]
    %v73 = vld [vmem:[#allocation5 + $0x70] sm:$0xff]
    %v74 = vld [vmem:[#allocation5 + $0x78] sm:$0xff]
    %v75 = vld [vmem:[#allocation5 + $0x80] sm:$0xff]
    %v76 = vld [vmem:[#allocation5 + $0x88] sm:$0xff]
    %v77 = vld [vmem:[#allocation5 + $0x90] sm:$0xff]
    %v78 = vld [vmem:[#allocation5 + $0x98] sm:$0xff]
    %v79 = vld [vmem:[#allocation5 + $0xa0] sm:$0xff]
    %v80 = vld [vmem:[#allocation5 + $0xa8] sm:$0xff]
    %v81 = vld [vmem:[#allocation5 + $0xb0] sm:$0xff]
    %v82 = vld [vmem:[#allocation5 + $0xb8] sm:$0xff]
    %v83 = vld [vmem:[#allocation5 + $0xc0] sm:$0xff]
    %v84 = vld [vmem:[#allocation5 + $0xc8] sm:$0xff]
    %v85 = vld [vmem:[#allocation5 + $0xd0] sm:$0xff]
    %v86 = vld [vmem:[#allocation5 + $0xd8] sm:$0xff]
    %v87 = vld [vmem:[#allocation5 + $0xe0] sm:$0xff]
    %v88 = vld [vmem:[#allocation5 + $0xe8] sm:$0xff]
    %v89 = vld [vmem:[#allocation5 + $0xf0] sm:$0xff]
    %v90 = vld [vmem:[#allocation5 + $0xf8] sm:$0xff]
    %v91 = vld [vmem:[#allocation5 + $0x100] sm:$0xff]
    %v92 = vld [vmem:[#allocation5 + $0x108] sm:$0xff]
    %v93 = vld [vmem:[#allocation5 + $0x110] sm:$0xff]
    %v94 = vld [vmem:[#allocation5 + $0x118] sm:$0xff]
    %v95 = vld [vmem:[#allocation5 + $0x120] sm:$0xff]
    %v96 = vld [vmem:[#allocation5 + $0x128] sm:$0xff]
    %v97 = vld [vmem:[#allocation5 + $0x130] sm:$0xff]
    %v98 = vld [vmem:[#allocation5 + $0x138] sm:$0xff]
    %v99 = vld [vmem:[#allocation5 + $0x140] sm:$0xff]
    %v100 = vld [vmem:[#allocation5 + $0x148] sm:$0xff]
    %v101 = vld [vmem:[#allocation5 + $0x150] sm:$0xff]
    %v102 = vld [vmem:[#allocation5 + $0x158] sm:$0xff]
    %v103 = vld [vmem:[#allocation5 + $0x160] sm:$0xff]
    %v104 = vld [vmem:[#allocation5 + $0x168] sm:$0xff]
    %v105 = vld [vmem:[#allocation5 + $0x170] sm:$0xff]
    %v106 = vld [vmem:[#allocation5 + $0x178] sm:$0xff]
    %v107 = vld [vmem:[#allocation5 + $0x180] sm:$0xff]
    %v108 = vld [vmem:[#allocation5 + $0x188] sm:$0xff]
    %v109 = vld [vmem:[#allocation5 + $0x190] sm:$0xff]
    %v110 = vld [vmem:[#allocation5 + $0x198] sm:$0xff]
    %v111 = vld [vmem:[#allocation5 + $0x1a0] sm:$0xff]
    %v112 = vld [vmem:[#allocation5 + $0x1a8] sm:$0xff]
    %v113 = vld [vmem:[#allocation5 + $0x1b0] sm:$0xff]
    %v114 = vld [vmem:[#allocation5 + $0x1b8] sm:$0xff]
    %v115 = vld [vmem:[#allocation5 + $0x1c0] sm:$0xff]
    %v116 = vld [vmem:[#allocation5 + $0x1c8] sm:$0xff]
    %v117 = vld [vmem:[#allocation5 + $0x1d0] sm:$0xff]
    %v118 = vld [vmem:[#allocation5 + $0x1d8] sm:$0xff]
    %v119 = vld [vmem:[#allocation5 + $0x1e0] sm:$0xff]
    %v120 = vld [vmem:[#allocation5 + $0x1e8] sm:$0xff]
    %v121 = vld [vmem:[#allocation5 + $0x1f0] sm:$0xff]
    %v122 = vld [vmem:[#allocation5 + $0x1f8] sm:$0xff]
    %v123 = vld [vmem:[#allocation5 + $0x200] sm:$0xff]
    %v124 = vld [vmem:[#allocation5 + $0x208] sm:$0xff]
    %v125 = vld [vmem:[#allocation5 + $0x210] sm:$0xff]
    %v126 = vld [vmem:[#allocation5 + $0x218] sm:$0xff]
    %v127 = vld [vmem:[#allocation5 + $0x220] sm:$0xff]
    %v128 = vld [vmem:[#allocation5 + $0x228] sm:$0xff]
    %v129 = vld [vmem:[#allocation5 + $0x230] sm:$0xff]
    %v130 = vld [vmem:[#allocation5 + $0x238] sm:$0xff]
    %v131 = vld [vmem:[#allocation5 + $0x240] sm:$0xff]
    %v132 = vld [vmem:[#allocation5 + $0x248] sm:$0xff]
    %v133 = vld [vmem:[#allocation5 + $0x250] sm:$0xff]
    %v134 = vld [vmem:[#allocation5 + $0x258] sm:$0xff]
    %v135 = vld [vmem:[#allocation5 + $0x260] sm:$0xff]
    %v136 = vld [vmem:[#allocation5 + $0x268] sm:$0xff]
    %v137 = vld [vmem:[#allocation5 + $0x270] sm:$0xff]
    %v138 = vld [vmem:[#allocation5 + $0x278] sm:$0xff]
    %v139 = vld [vmem:[#allocation5 + $0x280] sm:$0xff]
    %v140 = vld [vmem:[#allocation5 + $0x288] sm:$0xff]
    %v141 = vld [vmem:[#allocation5 + $0x290] sm:$0xff]
    %v142 = vld [vmem:[#allocation5 + $0x298] sm:$0xff]
    %v143 = vld [vmem:[#allocation5 + $0x2a0] sm:$0xff]
    %v144 = vld [vmem:[#allocation5 + $0x2a8] sm:$0xff]
    %v145 = vld [vmem:[#allocation5 + $0x2b0] sm:$0xff]
    %v146 = vld [vmem:[#allocation5 + $0x2b8] sm:$0xff]
    %v147 = vld [vmem:[#allocation5 + $0x2c0] sm:$0xff]
    %v148 = vld [vmem:[#allocation5 + $0x2c8] sm:$0xff]
    %v149 = vld [vmem:[#allocation5 + $0x2d0] sm:$0xff]
    %v150 = vld [vmem:[#allocation5 + $0x2d8] sm:$0xff]
    %v151 = vld [vmem:[#allocation5 + $0x2e0] sm:$0xff]
    %v152 = vld [vmem:[#allocation5 + $0x2e8] sm:$0xff]
    %v153 = vld [vmem:[#allocation5 + $0x2f0] sm:$0xff]
    %v154 = vld [vmem:[#allocation5 + $0x2f8] sm:$0xff]
    %v155 = vld [vmem:[#allocation5 + $0x300] sm:$0xff]
    %v156 = vld [vmem:[#allocation5 + $0x308] sm:$0xff]
    %v157 = vld [vmem:[#allocation5 + $0x310] sm:$0xff]
    %v158 = vld [vmem:[#allocation5 + $0x318] sm:$0xff]
    %v159 = vld [vmem:[#allocation5 + $0x320] sm:$0xff]
    %v160 = vld [vmem:[#allocation5 + $0x328] sm:$0xff]
    %v161 = vld [vmem:[#allocation5 + $0x330] sm:$0xff]
    %v162 = vld [vmem:[#allocation5 + $0x338] sm:$0xff]
    %v163 = vld [vmem:[#allocation5 + $0x340] sm:$0xff]
    %v164 = vld [vmem:[#allocation5 + $0x348] sm:$0xff]
    %v165 = vld [vmem:[#allocation5 + $0x350] sm:$0xff]
    %v166 = vld [vmem:[#allocation5 + $0x358] sm:$0xff]
    %v167 = vld [vmem:[#allocation5 + $0x360] sm:$0xff]
    %v168 = vld [vmem:[#allocation5 + $0x368] sm:$0xff]
    %v169 = vld [vmem:[#allocation5 + $0x370] sm:$0xff]
    %v170 = vld [vmem:[#allocation5 + $0x378] sm:$0xff]
    %v171 = vld [vmem:[#allocation5 + $0x380] sm:$0xff]
    %v172 = vld [vmem:[#allocation5 + $0x388] sm:$0xff]
    %v173 = vld [vmem:[#allocation5 + $0x390] sm:$0xff]
    %v174 = vld [vmem:[#allocation5 + $0x398] sm:$0xff]
    %v175 = vld [vmem:[#allocation5 + $0x3a0] sm:$0xff]
    %v176 = vld [vmem:[#allocation5 + $0x3a8] sm:$0xff]
    %v177 = vld [vmem:[#allocation5 + $0x3b0] sm:$0xff]
    %v178 = vld [vmem:[#allocation5 + $0x3b8] sm:$0xff]
    %v179 = vld [vmem:[#allocation5 + $0x3c0] sm:$0xff]
    %v180 = vld [vmem:[#allocation5 + $0x3c8] sm:$0xff]
    %v181 = vld [vmem:[#allocation5 + $0x3d0] sm:$0xff]
    %v182 = vld [vmem:[#allocation5 + $0x3d8] sm:$0xff]
    %v183 = vld [vmem:[#allocation5 + $0x3e0] sm:$0xff]
    %v184 = vld [vmem:[#allocation5 + $0x3e8] sm:$0xff]
    %v185 = vld [vmem:[#allocation5 + $0x3f0] sm:$0xff]
    %v186 = vld [vmem:[#allocation5 + $0x3f8] sm:$0xff]
    %v187 = vld [vmem:[#allocation7] sm:$0xff]
    %v188 = vld [vmem:[#allocation7 + $0x8] sm:$0xff]
    %v191 = vlaneseq
    %v192 = vshrl.u32 %v191, 7
    %v193 = vsub.s32 0, %v192
    %v194 = vrot.slane %v187, %v193
    %v195 = vlaneseq
    %v196 = vshrl.u32 %v195, 7
    %v197 = vsub.s32 1, %v196
    %v198 = vrot.slane %v187, %v197
    %v199 = vlaneseq
    %v200 = vshrl.u32 %v199, 7
    %v201 = vsub.s32 2, %v200
    %v202 = vrot.slane %v187, %v201
    %v203 = vlaneseq
    %v204 = vshrl.u32 %v203, 7
    %v205 = vsub.s32 3, %v204
    %v206 = vrot.slane %v187, %v205
    %v207 = vlaneseq
    %v208 = vshrl.u32 %v207, 7
    %v209 = vsub.s32 4, %v208
    %v210 = vrot.slane %v187, %v209
    %v211 = vlaneseq
    %v212 = vshrl.u32 %v211, 7
    %v213 = vsub.s32 5, %v212
    %v214 = vrot.slane %v187, %v213
    %v215 = vlaneseq
    %v216 = vshrl.u32 %v215, 7
    %v217 = vsub.s32 6, %v216
    %v218 = vrot.slane %v187, %v217
    %v219 = vlaneseq
    %v220 = vshrl.u32 %v219, 7
    %v221 = vsub.s32 7, %v220
    %v222 = vrot.slane %v187, %v221
    %v223 = vlaneseq
    %v224 = vshrl.u32 %v223, 7
    %v225 = vsub.s32 0, %v224
    %v226 = vrot.slane %v188, %v225
    %v227 = vlaneseq
    %v228 = vshrl.u32 %v227, 7
    %v229 = vsub.s32 1, %v228
    %v230 = vrot.slane %v188, %v229
    %v231 = vlaneseq
    %v232 = vshrl.u32 %v231, 7
    %v233 = vsub.s32 2, %v232
    %v234 = vrot.slane %v188, %v233
    %v235 = vlaneseq
    %v236 = vshrl.u32 %v235, 7
    %v237 = vsub.s32 3, %v236
    %v238 = vrot.slane %v188, %v237
    %v239 = vlaneseq
    %v240 = vshrl.u32 %v239, 7
    %v241 = vsub.s32 4, %v240
    %v242 = vrot.slane %v188, %v241
    %v243 = vlaneseq
    %v244 = vshrl.u32 %v243, 7
    %v245 = vsub.s32 5, %v244
    %v246 = vrot.slane %v188, %v245
    %v247 = vlaneseq
    %v248 = vshrl.u32 %v247, 7
    %v249 = vsub.s32 6, %v248
    %v250 = vrot.slane %v188, %v249
    %v251 = vlaneseq
    %v252 = vshrl.u32 %v251, 7
    %v253 = vsub.s32 7, %v252
    %v254 = vrot.slane %v188, %v253
    %v275 = vunpack.c.l.b16 %v55
    %v276 = vunpack.c.l.b16 %v56
    %v277 = vunpack.c.l.b16 %v57
    %v278 = vunpack.c.l.b16 %v58
    %v279 = vpack.c.b16 %v276, %v275
    %v280 = vpack.c.b16 %v278, %v277
    %v411 = vunpack.c.l.b16 %v59
    %v412 = vunpack.c.h.b16 %v59
    %v413 = vunpack.c.l.b16 %v60
    %v414 = vunpack.c.h.b16 %v60
    %v415 = vunpack.c.l.b16 %v61
    %v416 = vunpack.c.h.b16 %v61
    %v417 = vunpack.c.l.b16 %v62
    %v418 = vunpack.c.h.b16 %v62
    %v419 = vunpack.c.l.b16 %v63
    %v420 = vunpack.c.h.b16 %v63
    %v421 = vunpack.c.l.b16 %v64
    %v422 = vunpack.c.h.b16 %v64
    %v423 = vunpack.c.l.b16 %v65
    %v424 = vunpack.c.h.b16 %v65
    %v425 = vunpack.c.l.b16 %v66
    %v426 = vunpack.c.h.b16 %v66
    %v427 = vunpack.c.l.b16 %v67
    %v428 = vunpack.c.h.b16 %v67
    %v429 = vunpack.c.l.b16 %v68
    %v430 = vunpack.c.h.b16 %v68
    %v431 = vunpack.c.l.b16 %v69
    %v432 = vunpack.c.h.b16 %v69
    %v433 = vunpack.c.l.b16 %v70
    %v434 = vunpack.c.h.b16 %v70
    %v435 = vunpack.c.l.b16 %v71
    %v436 = vunpack.c.h.b16 %v71
    %v437 = vunpack.c.l.b16 %v72
    %v438 = vunpack.c.h.b16 %v72
    %v439 = vunpack.c.l.b16 %v73
    %v440 = vunpack.c.h.b16 %v73
    %v441 = vunpack.c.l.b16 %v74
    %v442 = vunpack.c.h.b16 %v74
    %v443 = vunpack.c.l.b16 %v75
    %v444 = vunpack.c.h.b16 %v75
    %v445 = vunpack.c.l.b16 %v76
    %v446 = vunpack.c.h.b16 %v76
    %v447 = vunpack.c.l.b16 %v77
    %v448 = vunpack.c.h.b16 %v77
    %v449 = vunpack.c.l.b16 %v78
    %v450 = vunpack.c.h.b16 %v78
    %v451 = vunpack.c.l.b16 %v79
    %v452 = vunpack.c.h.b16 %v79
    %v453 = vunpack.c.l.b16 %v80
    %v454 = vunpack.c.h.b16 %v80
    %v455 = vunpack.c.l.b16 %v81
    %v456 = vunpack.c.h.b16 %v81
    %v457 = vunpack.c.l.b16 %v82
    %v458 = vunpack.c.h.b16 %v82
    %v459 = vunpack.c.l.b16 %v83
    %v460 = vunpack.c.h.b16 %v83
    %v461 = vunpack.c.l.b16 %v84
    %v462 = vunpack.c.h.b16 %v84
    %v463 = vunpack.c.l.b16 %v85
    %v464 = vunpack.c.h.b16 %v85
    %v465 = vunpack.c.l.b16 %v86
    %v466 = vunpack.c.h.b16 %v86
    %v467 = vunpack.c.l.b16 %v87
    %v468 = vunpack.c.h.b16 %v87
    %v469 = vunpack.c.l.b16 %v88
    %v470 = vunpack.c.h.b16 %v88
    %v471 = vunpack.c.l.b16 %v89
    %v472 = vunpack.c.h.b16 %v89
    %v473 = vunpack.c.l.b16 %v90
    %v474 = vunpack.c.h.b16 %v90
    %v475 = vunpack.c.l.b16 %v91
    %v476 = vunpack.c.h.b16 %v91
    %v477 = vunpack.c.l.b16 %v92
    %v478 = vunpack.c.h.b16 %v92
    %v479 = vunpack.c.l.b16 %v93
    %v480 = vunpack.c.h.b16 %v93
    %v481 = vunpack.c.l.b16 %v94
    %v482 = vunpack.c.h.b16 %v94
    %v483 = vunpack.c.l.b16 %v95
    %v484 = vunpack.c.h.b16 %v95
    %v485 = vunpack.c.l.b16 %v96
    %v486 = vunpack.c.h.b16 %v96
    %v487 = vunpack.c.l.b16 %v97
    %v488 = vunpack.c.h.b16 %v97
    %v489 = vunpack.c.l.b16 %v98
    %v490 = vunpack.c.h.b16 %v98
    %v491 = vunpack.c.l.b16 %v99
    %v492 = vunpack.c.h.b16 %v99
    %v493 = vunpack.c.l.b16 %v100
    %v494 = vunpack.c.h.b16 %v100
    %v495 = vunpack.c.l.b16 %v101
    %v496 = vunpack.c.h.b16 %v101
    %v497 = vunpack.c.l.b16 %v102
    %v498 = vunpack.c.h.b16 %v102
    %v499 = vunpack.c.l.b16 %v103
    %v500 = vunpack.c.h.b16 %v103
    %v501 = vunpack.c.l.b16 %v104
    %v502 = vunpack.c.h.b16 %v104
    %v503 = vunpack.c.l.b16 %v105
    %v504 = vunpack.c.h.b16 %v105
    %v505 = vunpack.c.l.b16 %v106
    %v506 = vunpack.c.h.b16 %v106
    %v507 = vunpack.c.l.b16 %v107
    %v508 = vunpack.c.h.b16 %v107
    %v509 = vunpack.c.l.b16 %v108
    %v510 = vunpack.c.h.b16 %v108
    %v511 = vunpack.c.l.b16 %v109
    %v512 = vunpack.c.h.b16 %v109
    %v513 = vunpack.c.l.b16 %v110
    %v514 = vunpack.c.h.b16 %v110
    %v515 = vunpack.c.l.b16 %v111
    %v516 = vunpack.c.h.b16 %v111
    %v517 = vunpack.c.l.b16 %v112
    %v518 = vunpack.c.h.b16 %v112
    %v519 = vunpack.c.l.b16 %v113
    %v520 = vunpack.c.h.b16 %v113
    %v521 = vunpack.c.l.b16 %v114
    %v522 = vunpack.c.h.b16 %v114
    %v523 = vunpack.c.l.b16 %v115
    %v524 = vunpack.c.h.b16 %v115
    %v525 = vunpack.c.l.b16 %v116
    %v526 = vunpack.c.h.b16 %v116
    %v527 = vunpack.c.l.b16 %v117
    %v528 = vunpack.c.h.b16 %v117
    %v529 = vunpack.c.l.b16 %v118
    %v530 = vunpack.c.h.b16 %v118
    %v531 = vunpack.c.l.b16 %v119
    %v532 = vunpack.c.h.b16 %v119
    %v533 = vunpack.c.l.b16 %v120
    %v534 = vunpack.c.h.b16 %v120
    %v535 = vunpack.c.l.b16 %v121
    %v536 = vunpack.c.h.b16 %v121
    %v537 = vunpack.c.l.b16 %v122
    %v538 = vunpack.c.h.b16 %v122
    %v539 = vunpack.c.l.b16 %v123
    %v540 = vunpack.c.h.b16 %v123
    %v541 = vunpack.c.l.b16 %v124
    %v542 = vunpack.c.h.b16 %v124
    %v543 = vunpack.c.l.b16 %v125
    %v544 = vunpack.c.h.b16 %v125
    %v545 = vunpack.c.l.b16 %v126
    %v546 = vunpack.c.h.b16 %v126
    %v547 = vunpack.c.l.b16 %v127
    %v548 = vunpack.c.h.b16 %v127
    %v549 = vunpack.c.l.b16 %v128
    %v550 = vunpack.c.h.b16 %v128
    %v551 = vunpack.c.l.b16 %v129
    %v552 = vunpack.c.h.b16 %v129
    %v553 = vunpack.c.l.b16 %v130
    %v554 = vunpack.c.h.b16 %v130
    %v555 = vunpack.c.l.b16 %v131
    %v556 = vunpack.c.h.b16 %v131
    %v557 = vunpack.c.l.b16 %v132
    %v558 = vunpack.c.h.b16 %v132
    %v559 = vunpack.c.l.b16 %v133
    %v560 = vunpack.c.h.b16 %v133
    %v561 = vunpack.c.l.b16 %v134
    %v562 = vunpack.c.h.b16 %v134
    %v563 = vunpack.c.l.b16 %v135
    %v564 = vunpack.c.h.b16 %v135
    %v565 = vunpack.c.l.b16 %v136
    %v566 = vunpack.c.h.b16 %v136
    %v567 = vunpack.c.l.b16 %v137
    %v568 = vunpack.c.h.b16 %v137
    %v569 = vunpack.c.l.b16 %v138
    %v570 = vunpack.c.h.b16 %v138
    %v571 = vunpack.c.l.b16 %v139
    %v572 = vunpack.c.h.b16 %v139
    %v573 = vunpack.c.l.b16 %v140
    %v574 = vunpack.c.h.b16 %v140
    %v575 = vunpack.c.l.b16 %v141
    %v576 = vunpack.c.h.b16 %v141
    %v577 = vunpack.c.l.b16 %v142
    %v578 = vunpack.c.h.b16 %v142
    %v579 = vunpack.c.l.b16 %v143
    %v580 = vunpack.c.h.b16 %v143
    %v581 = vunpack.c.l.b16 %v144
    %v582 = vunpack.c.h.b16 %v144
    %v583 = vunpack.c.l.b16 %v145
    %v584 = vunpack.c.h.b16 %v145
    %v585 = vunpack.c.l.b16 %v146
    %v586 = vunpack.c.h.b16 %v146
    %v587 = vunpack.c.l.b16 %v147
    %v588 = vunpack.c.h.b16 %v147
    %v589 = vunpack.c.l.b16 %v148
    %v590 = vunpack.c.h.b16 %v148
    %v591 = vunpack.c.l.b16 %v149
    %v592 = vunpack.c.h.b16 %v149
    %v593 = vunpack.c.l.b16 %v150
    %v594 = vunpack.c.h.b16 %v150
    %v595 = vunpack.c.l.b16 %v151
    %v596 = vunpack.c.h.b16 %v151
    %v597 = vunpack.c.l.b16 %v152
    %v598 = vunpack.c.h.b16 %v152
    %v599 = vunpack.c.l.b16 %v153
    %v600 = vunpack.c.h.b16 %v153
    %v601 = vunpack.c.l.b16 %v154
    %v602 = vunpack.c.h.b16 %v154
    %v603 = vunpack.c.l.b16 %v155
    %v604 = vunpack.c.h.b16 %v155
    %v605 = vunpack.c.l.b16 %v156
    %v606 = vunpack.c.h.b16 %v156
    %v607 = vunpack.c.l.b16 %v157
    %v608 = vunpack.c.h.b16 %v157
    %v609 = vunpack.c.l.b16 %v158
    %v610 = vunpack.c.h.b16 %v158
    %v611 = vunpack.c.l.b16 %v159
    %v612 = vunpack.c.h.b16 %v159
    %v613 = vunpack.c.l.b16 %v160
    %v614 = vunpack.c.h.b16 %v160
    %v615 = vunpack.c.l.b16 %v161
    %v616 = vunpack.c.h.b16 %v161
    %v617 = vunpack.c.l.b16 %v162
    %v618 = vunpack.c.h.b16 %v162
    %v619 = vunpack.c.l.b16 %v163
    %v620 = vunpack.c.h.b16 %v163
    %v621 = vunpack.c.l.b16 %v164
    %v622 = vunpack.c.h.b16 %v164
    %v623 = vunpack.c.l.b16 %v165
    %v624 = vunpack.c.h.b16 %v165
    %v625 = vunpack.c.l.b16 %v166
    %v626 = vunpack.c.h.b16 %v166
    %v627 = vunpack.c.l.b16 %v167
    %v628 = vunpack.c.h.b16 %v167
    %v629 = vunpack.c.l.b16 %v168
    %v630 = vunpack.c.h.b16 %v168
    %v631 = vunpack.c.l.b16 %v169
    %v632 = vunpack.c.h.b16 %v169
    %v633 = vunpack.c.l.b16 %v170
    %v634 = vunpack.c.h.b16 %v170
    %v635 = vunpack.c.l.b16 %v171
    %v636 = vunpack.c.h.b16 %v171
    %v637 = vunpack.c.l.b16 %v172
    %v638 = vunpack.c.h.b16 %v172
    %v639 = vunpack.c.l.b16 %v173
    %v640 = vunpack.c.h.b16 %v173
    %v641 = vunpack.c.l.b16 %v174
    %v642 = vunpack.c.h.b16 %v174
    %v643 = vunpack.c.l.b16 %v175
    %v644 = vunpack.c.h.b16 %v175
    %v645 = vunpack.c.l.b16 %v176
    %v646 = vunpack.c.h.b16 %v176
    %v647 = vunpack.c.l.b16 %v177
    %v648 = vunpack.c.h.b16 %v177
    %v649 = vunpack.c.l.b16 %v178
    %v650 = vunpack.c.h.b16 %v178
    %v651 = vunpack.c.l.b16 %v179
    %v652 = vunpack.c.h.b16 %v179
    %v653 = vunpack.c.l.b16 %v180
    %v654 = vunpack.c.h.b16 %v180
    %v655 = vunpack.c.l.b16 %v181
    %v656 = vunpack.c.h.b16 %v181
    %v657 = vunpack.c.l.b16 %v182
    %v658 = vunpack.c.h.b16 %v182
    %v659 = vunpack.c.l.b16 %v183
    %v660 = vunpack.c.h.b16 %v183
    %v661 = vunpack.c.l.b16 %v184
    %v662 = vunpack.c.h.b16 %v184
    %v663 = vunpack.c.l.b16 %v185
    %v664 = vunpack.c.h.b16 %v185
    %v665 = vunpack.c.l.b16 %v186
    %v666 = vunpack.c.h.b16 %v186
    %v667 = vpack.c.b16 %v427, %v411
    %v668 = vpack.c.b16 %v428, %v412
    %v669 = vpack.c.b16 %v429, %v413
    %v670 = vpack.c.b16 %v430, %v414
    %v671 = vpack.c.b16 %v431, %v415
    %v672 = vpack.c.b16 %v432, %v416
    %v673 = vpack.c.b16 %v433, %v417
    %v674 = vpack.c.b16 %v434, %v418
    %v675 = vpack.c.b16 %v435, %v419
    %v676 = vpack.c.b16 %v436, %v420
    %v677 = vpack.c.b16 %v437, %v421
    %v678 = vpack.c.b16 %v438, %v422
    %v679 = vpack.c.b16 %v439, %v423
    %v680 = vpack.c.b16 %v440, %v424
    %v681 = vpack.c.b16 %v441, %v425
    %v682 = vpack.c.b16 %v442, %v426
    %v683 = vpack.c.b16 %v459, %v443
    %v684 = vpack.c.b16 %v460, %v444
    %v685 = vpack.c.b16 %v461, %v445
    %v686 = vpack.c.b16 %v462, %v446
    %v687 = vpack.c.b16 %v463, %v447
    %v688 = vpack.c.b16 %v464, %v448
    %v689 = vpack.c.b16 %v465, %v449
    %v690 = vpack.c.b16 %v466, %v450
    %v691 = vpack.c.b16 %v467, %v451
    %v692 = vpack.c.b16 %v468, %v452
    %v693 = vpack.c.b16 %v469, %v453
    %v694 = vpack.c.b16 %v470, %v454
    %v695 = vpack.c.b16 %v471, %v455
    %v696 = vpack.c.b16 %v472, %v456
    %v697 = vpack.c.b16 %v473, %v457
    %v698 = vpack.c.b16 %v474, %v458
    %v699 = vpack.c.b16 %v491, %v475
    %v700 = vpack.c.b16 %v492, %v476
    %v701 = vpack.c.b16 %v493, %v477
    %v702 = vpack.c.b16 %v494, %v478
    %v703 = vpack.c.b16 %v495, %v479
    %v704 = vpack.c.b16 %v496, %v480
    %v705 = vpack.c.b16 %v497, %v481
    %v706 = vpack.c.b16 %v498, %v482
    %v707 = vpack.c.b16 %v499, %v483
    %v708 = vpack.c.b16 %v500, %v484
    %v709 = vpack.c.b16 %v501, %v485
    %v710 = vpack.c.b16 %v502, %v486
    %v711 = vpack.c.b16 %v503, %v487
    %v712 = vpack.c.b16 %v504, %v488
    %v713 = vpack.c.b16 %v505, %v489
    %v714 = vpack.c.b16 %v506, %v490
    %v715 = vpack.c.b16 %v523, %v507
    %v716 = vpack.c.b16 %v524, %v508
    %v717 = vpack.c.b16 %v525, %v509
    %v718 = vpack.c.b16 %v526, %v510
    %v719 = vpack.c.b16 %v527, %v511
    %v720 = vpack.c.b16 %v528, %v512
    %v721 = vpack.c.b16 %v529, %v513
    %v722 = vpack.c.b16 %v530, %v514
    %v723 = vpack.c.b16 %v531, %v515
    %v724 = vpack.c.b16 %v532, %v516
    %v725 = vpack.c.b16 %v533, %v517
    %v726 = vpack.c.b16 %v534, %v518
    %v727 = vpack.c.b16 %v535, %v519
    %v728 = vpack.c.b16 %v536, %v520
    %v729 = vpack.c.b16 %v537, %v521
    %v730 = vpack.c.b16 %v538, %v522
    %v731 = vpack.c.b16 %v555, %v539
    %v732 = vpack.c.b16 %v556, %v540
    %v733 = vpack.c.b16 %v557, %v541
    %v734 = vpack.c.b16 %v558, %v542
    %v735 = vpack.c.b16 %v559, %v543
    %v736 = vpack.c.b16 %v560, %v544
    %v737 = vpack.c.b16 %v561, %v545
    %v738 = vpack.c.b16 %v562, %v546
    %v739 = vpack.c.b16 %v563, %v547
    %v740 = vpack.c.b16 %v564, %v548
    %v741 = vpack.c.b16 %v565, %v549
    %v742 = vpack.c.b16 %v566, %v550
    %v743 = vpack.c.b16 %v567, %v551
    %v744 = vpack.c.b16 %v568, %v552
    %v745 = vpack.c.b16 %v569, %v553
    %v746 = vpack.c.b16 %v570, %v554
    %v747 = vpack.c.b16 %v587, %v571
    %v748 = vpack.c.b16 %v588, %v572
    %v749 = vpack.c.b16 %v589, %v573
    %v750 = vpack.c.b16 %v590, %v574
    %v751 = vpack.c.b16 %v591, %v575
    %v752 = vpack.c.b16 %v592, %v576
    %v753 = vpack.c.b16 %v593, %v577
    %v754 = vpack.c.b16 %v594, %v578
    %v755 = vpack.c.b16 %v595, %v579
    %v756 = vpack.c.b16 %v596, %v580
    %v757 = vpack.c.b16 %v597, %v581
    %v758 = vpack.c.b16 %v598, %v582
    %v759 = vpack.c.b16 %v599, %v583
    %v760 = vpack.c.b16 %v600, %v584
    %v761 = vpack.c.b16 %v601, %v585
    %v762 = vpack.c.b16 %v602, %v586
    %v763 = vpack.c.b16 %v619, %v603
    %v764 = vpack.c.b16 %v620, %v604
    %v765 = vpack.c.b16 %v621, %v605
    %v766 = vpack.c.b16 %v622, %v606
    %v767 = vpack.c.b16 %v623, %v607
    %v768 = vpack.c.b16 %v624, %v608
    %v769 = vpack.c.b16 %v625, %v609
    %v770 = vpack.c.b16 %v626, %v610
    %v771 = vpack.c.b16 %v627, %v611
    %v772 = vpack.c.b16 %v628, %v612
    %v773 = vpack.c.b16 %v629, %v613
    %v774 = vpack.c.b16 %v630, %v614
    %v775 = vpack.c.b16 %v631, %v615
    %v776 = vpack.c.b16 %v632, %v616
    %v777 = vpack.c.b16 %v633, %v617
    %v778 = vpack.c.b16 %v634, %v618
    %v779 = vpack.c.b16 %v651, %v635
    %v780 = vpack.c.b16 %v652, %v636
    %v781 = vpack.c.b16 %v653, %v637
    %v782 = vpack.c.b16 %v654, %v638
    %v783 = vpack.c.b16 %v655, %v639
    %v784 = vpack.c.b16 %v656, %v640
    %v785 = vpack.c.b16 %v657, %v641
    %v786 = vpack.c.b16 %v658, %v642
    %v787 = vpack.c.b16 %v659, %v643
    %v788 = vpack.c.b16 %v660, %v644
    %v789 = vpack.c.b16 %v661, %v645
    %v790 = vpack.c.b16 %v662, %v646
    %v791 = vpack.c.b16 %v663, %v647
    %v792 = vpack.c.b16 %v664, %v648
    %v793 = vpack.c.b16 %v665, %v649
    %v794 = vpack.c.b16 %v666, %v650
    %923 = vmatprep.subr.bf16.mxu0 %v668
    %924 = vmatpush1.bf16.msra.mxu0 %v667
    %925 = vmatprep.subr.bf16.mxu0 %v684
    %926 = vmatpush1.bf16.msra.mxu0 %v683
    %927 = vmatprep.subr.bf16.mxu0 %v700
    %928 = vmatpush1.bf16.msra.mxu0 %v699
    %929 = vmatprep.subr.bf16.mxu0 %v716
    %930 = vmatpush1.bf16.msra.mxu0 %v715
    %931 = vmatprep.subr.bf16.mxu0 %v732
    %932 = vmatpush1.bf16.msra.mxu0 %v731
    %933 = vmatprep.subr.bf16.mxu0 %v748
    %934 = vmatpush1.bf16.msra.mxu0 %v747
    %935 = vmatprep.subr.bf16.mxu0 %v764
    %936 = vmatpush1.bf16.msra.mxu0 %v763
    %937 = vmatprep.subr.bf16.mxu0 %v780
    %938 = vmatpush1.bf16.msra.mxu0 %v779
    %939 = vmatprep.subr.bf16.mxu0 0
    %940 = vmatpush1.bf16.msra.mxu0 0
    %941 = vmatprep.subr.bf16.mxu0 0
    %942 = vmatpush1.bf16.msra.mxu0 0
    %943 = vmatprep.subr.bf16.mxu0 0
    %944 = vmatpush1.bf16.msra.mxu0 0
    %945 = vmatprep.subr.bf16.mxu0 0
    %946 = vmatpush1.bf16.msra.mxu0 0
    %947 = vmatprep.subr.bf16.mxu0 0
    %948 = vmatpush1.bf16.msra.mxu0 0
    %949 = vmatprep.subr.bf16.mxu0 0
    %950 = vmatpush1.bf16.msra.mxu0 0
    %951 = vmatprep.subr.bf16.mxu0 0
    %952 = vmatpush1.bf16.msra.mxu0 0
    %953 = vmatprep.subr.bf16.mxu0 0
    %954 = vmatpush1.bf16.msra.mxu0 0
    %955 = vmatprep.mubr.bf16.mxu0 0
    %956 = vmatmul.mubr.bf16.gmra.mrb[0].mxu0 %v279
    %v957 = vpop.f32.mrb[0].mxu0
    %v958 = vadd.f32 %v194, %v957
    %v959 = vpop.f32.mrb[0].mxu0
    %v960 = vadd.f32 %v198, %v959
    %v961 = vpop.f32.mrb[0].mxu0
    %v962 = vadd.f32 %v194, %v961
    %v963 = vpop.f32.mrb[0].mxu0
    %v964 = vadd.f32 %v198, %v963
    %965 = vmatprep.mubr.bf16.mxu0 0
    %966 = vmatmul.mubr.bf16.gmra.mrb[0].mxu0 %v280
    %v967 = vpop.f32.mrb[0].mxu0
    %v968 = vadd.f32 %v194, %v967
    %v969 = vpop.f32.mrb[0].mxu0
    %v970 = vadd.f32 %v198, %v969
    %v971 = vpop.f32.mrb[0].mxu0
    %v972 = vadd.f32 %v194, %v971
    %v973 = vpop.f32.mrb[0].mxu0
    %v974 = vadd.f32 %v198, %v973
    %975 = vdwg.mxu0
    %976 = vmatprep.subr.bf16.mxu0 %v670
    %977 = vmatpush1.bf16.msra.mxu0 %v669
    %978 = vmatprep.subr.bf16.mxu0 %v686
    %979 = vmatpush1.bf16.msra.mxu0 %v685
    %980 = vmatprep.subr.bf16.mxu0 %v702
    %981 = vmatpush1.bf16.msra.mxu0 %v701
    %982 = vmatprep.subr.bf16.mxu0 %v718
    %983 = vmatpush1.bf16.msra.mxu0 %v717
    %984 = vmatprep.subr.bf16.mxu0 %v734
    %985 = vmatpush1.bf16.msra.mxu0 %v733
    %986 = vmatprep.subr.bf16.mxu0 %v750
    %987 = vmatpush1.bf16.msra.mxu0 %v749
    %988 = vmatprep.subr.bf16.mxu0 %v766
    %989 = vmatpush1.bf16.msra.mxu0 %v765
    %990 = vmatprep.subr.bf16.mxu0 %v782
    %991 = vmatpush1.bf16.msra.mxu0 %v781
    %992 = vmatprep.subr.bf16.mxu0 0
    %993 = vmatpush1.bf16.msra.mxu0 0
    %994 = vmatprep.subr.bf16.mxu0 0
    %995 = vmatpush1.bf16.msra.mxu0 0
    %996 = vmatprep.subr.bf16.mxu0 0
    %997 = vmatpush1.bf16.msra.mxu0 0
    %998 = vmatprep.subr.bf16.mxu0 0
    %999 = vmatpush1.bf16.msra.mxu0 0
    %1000 = vmatprep.subr.bf16.mxu0 0
    %1001 = vmatpush1.bf16.msra.mxu0 0
    %1002 = vmatprep.subr.bf16.mxu0 0
    %1003 = vmatpush1.bf16.msra.mxu0 0
    %1004 = vmatprep.subr.bf16.mxu0 0
    %1005 = vmatpush1.bf16.msra.mxu0 0
    %1006 = vmatprep.subr.bf16.mxu0 0
    %1007 = vmatpush1.bf16.msra.mxu0 0
    %1008 = vmatprep.mubr.bf16.mxu0 0
    %1009 = vmatmul.mubr.bf16.gmra.mrb[0].mxu0 %v279
    %v1010 = vpop.f32.mrb[0].mxu0
    %v1011 = vadd.f32 %v202, %v1010
    %v1012 = vpop.f32.mrb[0].mxu0
    %v1013 = vadd.f32 %v206, %v1012
    %v1014 = vpop.f32.mrb[0].mxu0
    %v1015 = vadd.f32 %v202, %v1014
    %v1016 = vpop.f32.mrb[0].mxu0
    %v1017 = vadd.f32 %v206, %v1016
    %1018 = vmatprep.mubr.bf16.mxu0 0
    %1019 = vmatmul.mubr.bf16.gmra.mrb[0].mxu0 %v280
    %v1020 = vpop.f32.mrb[0].mxu0
    %v1021 = vadd.f32 %v202, %v1020
    %v1022 = vpop.f32.mrb[0].mxu0
    %v1023 = vadd.f32 %v206, %v1022
    %v1024 = vpop.f32.mrb[0].mxu0
    %v1025 = vadd.f32 %v202, %v1024
    %v1026 = vpop.f32.mrb[0].mxu0
    %v1027 = vadd.f32 %v206, %v1026
    %1028 = vdwg.mxu0
    %1029 = vmatprep.subr.bf16.mxu0 %v672
    %1030 = vmatpush1.bf16.msra.mxu0 %v671
    %1031 = vmatprep.subr.bf16.mxu0 %v688
    %1032 = vmatpush1.bf16.msra.mxu0 %v687
    %1033 = vmatprep.subr.bf16.mxu0 %v704
    %1034 = vmatpush1.bf16.msra.mxu0 %v703
    %1035 = vmatprep.subr.bf16.mxu0 %v720
    %1036 = vmatpush1.bf16.msra.mxu0 %v719
    %1037 = vmatprep.subr.bf16.mxu0 %v736
    %1038 = vmatpush1.bf16.msra.mxu0 %v735
    %1039 = vmatprep.subr.bf16.mxu0 %v752
    %1040 = vmatpush1.bf16.msra.mxu0 %v751
    %1041 = vmatprep.subr.bf16.mxu0 %v768
    %1042 = vmatpush1.bf16.msra.mxu0 %v767
    %1043 = vmatprep.subr.bf16.mxu0 %v784
    %1044 = vmatpush1.bf16.msra.mxu0 %v783
    %1045 = vmatprep.subr.bf16.mxu0 0
    %1046 = vmatpush1.bf16.msra.mxu0 0
    %1047 = vmatprep.subr.bf16.mxu0 0
    %1048 = vmatpush1.bf16.msra.mxu0 0
    %1049 = vmatprep.subr.bf16.mxu0 0
    %1050 = vmatpush1.bf16.msra.mxu0 0
    %1051 = vmatprep.subr.bf16.mxu0 0
    %1052 = vmatpush1.bf16.msra.mxu0 0
    %1053 = vmatprep.subr.bf16.mxu0 0
    %1054 = vmatpush1.bf16.msra.mxu0 0
    %1055 = vmatprep.subr.bf16.mxu0 0
    %1056 = vmatpush1.bf16.msra.mxu0 0
    %1057 = vmatprep.subr.bf16.mxu0 0
    %1058 = vmatpush1.bf16.msra.mxu0 0
    %1059 = vmatprep.subr.bf16.mxu0 0
    %1060 = vmatpush1.bf16.msra.mxu0 0
    %1061 = vmatprep.mubr.bf16.mxu0 0
    %1062 = vmatmul.mubr.bf16.gmra.mrb[0].mxu0 %v279
    %v1063 = vpop.f32.mrb[0].mxu0
    %v1064 = vadd.f32 %v210, %v1063
    %v1065 = vpop.f32.mrb[0].mxu0
    %v1066 = vadd.f32 %v214, %v1065
    %v1067 = vpop.f32.mrb[0].mxu0
    %v1068 = vadd.f32 %v210, %v1067
    %v1069 = vpop.f32.mrb[0].mxu0
    %v1070 = vadd.f32 %v214, %v1069
    %1071 = vmatprep.mubr.bf16.mxu0 0
    %1072 = vmatmul.mubr.bf16.gmra.mrb[0].mxu0 %v280
    %v1073 = vpop.f32.mrb[0].mxu0
    %v1074 = vadd.f32 %v210, %v1073
    %v1075 = vpop.f32.mrb[0].mxu0
    %v1076 = vadd.f32 %v214, %v1075
    %v1077 = vpop.f32.mrb[0].mxu0
    %v1078 = vadd.f32 %v210, %v1077
    %v1079 = vpop.f32.mrb[0].mxu0
    %v1080 = vadd.f32 %v214, %v1079
    %1081 = vdwg.mxu0
    %1082 = vmatprep.subr.bf16.mxu0 %v674
    %1083 = vmatpush1.bf16.msra.mxu0 %v673
    %1084 = vmatprep.subr.bf16.mxu0 %v690
    %1085 = vmatpush1.bf16.msra.mxu0 %v689
    %1086 = vmatprep.subr.bf16.mxu0 %v706
    %1087 = vmatpush1.bf16.msra.mxu0 %v705
    %1088 = vmatprep.subr.bf16.mxu0 %v722
    %1089 = vmatpush1.bf16.msra.mxu0 %v721
    %1090 = vmatprep.subr.bf16.mxu0 %v738
    %1091 = vmatpush1.bf16.msra.mxu0 %v737
    %1092 = vmatprep.subr.bf16.mxu0 %v754
    %1093 = vmatpush1.bf16.msra.mxu0 %v753
    %1094 = vmatprep.subr.bf16.mxu0 %v770
    %1095 = vmatpush1.bf16.msra.mxu0 %v769
    %1096 = vmatprep.subr.bf16.mxu0 %v786
    %1097 = vmatpush1.bf16.msra.mxu0 %v785
    %1098 = vmatprep.subr.bf16.mxu0 0
    %1099 = vmatpush1.bf16.msra.mxu0 0
    %1100 = vmatprep.subr.bf16.mxu0 0
    %1101 = vmatpush1.bf16.msra.mxu0 0
    %1102 = vmatprep.subr.bf16.mxu0 0
    %1103 = vmatpush1.bf16.msra.mxu0 0
    %1104 = vmatprep.subr.bf16.mxu0 0
    %1105 = vmatpush1.bf16.msra.mxu0 0
    %1106 = vmatprep.subr.bf16.mxu0 0
    %1107 = vmatpush1.bf16.msra.mxu0 0
    %1108 = vmatprep.subr.bf16.mxu0 0
    %1109 = vmatpush1.bf16.msra.mxu0 0
    %1110 = vmatprep.subr.bf16.mxu0 0
    %1111 = vmatpush1.bf16.msra.mxu0 0
    %1112 = vmatprep.subr.bf16.mxu0 0
    %1113 = vmatpush1.bf16.msra.mxu0 0
    %1114 = vmatprep.mubr.bf16.mxu0 0
    %1115 = vmatmul.mubr.bf16.gmra.mrb[0].mxu0 %v279
    %v1116 = vpop.f32.mrb[0].mxu0
    %v1117 = vadd.f32 %v218, %v1116
    %v1118 = vpop.f32.mrb[0].mxu0
    %v1119 = vadd.f32 %v222, %v1118
    %v1120 = vpop.f32.mrb[0].mxu0
    %v1121 = vadd.f32 %v218, %v1120
    %v1122 = vpop.f32.mrb[0].mxu0
    %v1123 = vadd.f32 %v222, %v1122
    %1124 = vmatprep.mubr.bf16.mxu0 0
    %1125 = vmatmul.mubr.bf16.gmra.mrb[0].mxu0 %v280
    %v1126 = vpop.f32.mrb[0].mxu0
    %v1127 = vadd.f32 %v218, %v1126
    %v1128 = vpop.f32.mrb[0].mxu0
    %v1129 = vadd.f32 %v222, %v1128
    %v1130 = vpop.f32.mrb[0].mxu0
    %v1131 = vadd.f32 %v218, %v1130
    %v1132 = vpop.f32.mrb[0].mxu0
    %v1133 = vadd.f32 %v222, %v1132
    %1134 = vdwg.mxu0
    %1135 = vmatprep.subr.bf16.mxu0 %v676
    %1136 = vmatpush1.bf16.msra.mxu0 %v675
    %1137 = vmatprep.subr.bf16.mxu0 %v692
    %1138 = vmatpush1.bf16.msra.mxu0 %v691
    %1139 = vmatprep.subr.bf16.mxu0 %v708
    %1140 = vmatpush1.bf16.msra.mxu0 %v707
    %1141 = vmatprep.subr.bf16.mxu0 %v724
    %1142 = vmatpush1.bf16.msra.mxu0 %v723
    %1143 = vmatprep.subr.bf16.mxu0 %v740
    %1144 = vmatpush1.bf16.msra.mxu0 %v739
    %1145 = vmatprep.subr.bf16.mxu0 %v756
    %1146 = vmatpush1.bf16.msra.mxu0 %v755
    %1147 = vmatprep.subr.bf16.mxu0 %v772
    %1148 = vmatpush1.bf16.msra.mxu0 %v771
    %1149 = vmatprep.subr.bf16.mxu0 %v788
    %1150 = vmatpush1.bf16.msra.mxu0 %v787
    %1151 = vmatprep.subr.bf16.mxu0 0
    %1152 = vmatpush1.bf16.msra.mxu0 0
    %1153 = vmatprep.subr.bf16.mxu0 0
    %1154 = vmatpush1.bf16.msra.mxu0 0
    %1155 = vmatprep.subr.bf16.mxu0 0
    %1156 = vmatpush1.bf16.msra.mxu0 0
    %1157 = vmatprep.subr.bf16.mxu0 0
    %1158 = vmatpush1.bf16.msra.mxu0 0
    %1159 = vmatprep.subr.bf16.mxu0 0
    %1160 = vmatpush1.bf16.msra.mxu0 0
    %1161 = vmatprep.subr.bf16.mxu0 0
    %1162 = vmatpush1.bf16.msra.mxu0 0
    %1163 = vmatprep.subr.bf16.mxu0 0
    %1164 = vmatpush1.bf16.msra.mxu0 0
    %1165 = vmatprep.subr.bf16.mxu0 0
    %1166 = vmatpush1.bf16.msra.mxu0 0
    %1167 = vmatprep.mubr.bf16.mxu0 0
    %1168 = vmatmul.mubr.bf16.gmra.mrb[0].mxu0 %v279
    %v1169 = vpop.f32.mrb[0].mxu0
    %v1170 = vadd.f32 %v226, %v1169
    %v1171 = vpop.f32.mrb[0].mxu0
    %v1172 = vadd.f32 %v230, %v1171
    %v1173 = vpop.f32.mrb[0].mxu0
    %v1174 = vadd.f32 %v226, %v1173
    %v1175 = vpop.f32.mrb[0].mxu0
    %v1176 = vadd.f32 %v230, %v1175
    %1177 = vmatprep.mubr.bf16.mxu0 0
    %1178 = vmatmul.mubr.bf16.gmra.mrb[0].mxu0 %v280
    %v1179 = vpop.f32.mrb[0].mxu0
    %v1180 = vadd.f32 %v226, %v1179
    %v1181 = vpop.f32.mrb[0].mxu0
    %v1182 = vadd.f32 %v230, %v1181
    %v1183 = vpop.f32.mrb[0].mxu0
    %v1184 = vadd.f32 %v226, %v1183
    %v1185 = vpop.f32.mrb[0].mxu0
    %v1186 = vadd.f32 %v230, %v1185
    %1187 = vdwg.mxu0
    %1188 = vmatprep.subr.bf16.mxu0 %v678
    %1189 = vmatpush1.bf16.msra.mxu0 %v677
    %1190 = vmatprep.subr.bf16.mxu0 %v694
    %1191 = vmatpush1.bf16.msra.mxu0 %v693
    %1192 = vmatprep.subr.bf16.mxu0 %v710
    %1193 = vmatpush1.bf16.msra.mxu0 %v709
    %1194 = vmatprep.subr.bf16.mxu0 %v726
    %1195 = vmatpush1.bf16.msra.mxu0 %v725
    %1196 = vmatprep.subr.bf16.mxu0 %v742
    %1197 = vmatpush1.bf16.msra.mxu0 %v741
    %1198 = vmatprep.subr.bf16.mxu0 %v758
    %1199 = vmatpush1.bf16.msra.mxu0 %v757
    %1200 = vmatprep.subr.bf16.mxu0 %v774
    %1201 = vmatpush1.bf16.msra.mxu0 %v773
    %1202 = vmatprep.subr.bf16.mxu0 %v790
    %1203 = vmatpush1.bf16.msra.mxu0 %v789
    %1204 = vmatprep.subr.bf16.mxu0 0
    %1205 = vmatpush1.bf16.msra.mxu0 0
    %1206 = vmatprep.subr.bf16.mxu0 0
    %1207 = vmatpush1.bf16.msra.mxu0 0
    %1208 = vmatprep.subr.bf16.mxu0 0
    %1209 = vmatpush1.bf16.msra.mxu0 0
    %1210 = vmatprep.subr.bf16.mxu0 0
    %1211 = vmatpush1.bf16.msra.mxu0 0
    %1212 = vmatprep.subr.bf16.mxu0 0
    %1213 = vmatpush1.bf16.msra.mxu0 0
    %1214 = vmatprep.subr.bf16.mxu0 0
    %1215 = vmatpush1.bf16.msra.mxu0 0
    %1216 = vmatprep.subr.bf16.mxu0 0
    %1217 = vmatpush1.bf16.msra.mxu0 0
    %1218 = vmatprep.subr.bf16.mxu0 0
    %1219 = vmatpush1.bf16.msra.mxu0 0
    %1220 = vmatprep.mubr.bf16.mxu0 0
    %1221 = vmatmul.mubr.bf16.gmra.mrb[0].mxu0 %v279
    %v1222 = vpop.f32.mrb[0].mxu0
    %v1223 = vadd.f32 %v234, %v1222
    %v1224 = vpop.f32.mrb[0].mxu0
    %v1225 = vadd.f32 %v238, %v1224
    %v1226 = vpop.f32.mrb[0].mxu0
    %v1227 = vadd.f32 %v234, %v1226
    %v1228 = vpop.f32.mrb[0].mxu0
    %v1229 = vadd.f32 %v238, %v1228
    %1230 = vmatprep.mubr.bf16.mxu0 0
    %1231 = vmatmul.mubr.bf16.gmra.mrb[0].mxu0 %v280
    %v1232 = vpop.f32.mrb[0].mxu0
    %v1233 = vadd.f32 %v234, %v1232
    %v1234 = vpop.f32.mrb[0].mxu0
    %v1235 = vadd.f32 %v238, %v1234
    %v1236 = vpop.f32.mrb[0].mxu0
    %v1237 = vadd.f32 %v234, %v1236
    %v1238 = vpop.f32.mrb[0].mxu0
    %v1239 = vadd.f32 %v238, %v1238
    %1240 = vdwg.mxu0
    %1241 = vmatprep.subr.bf16.mxu0 %v680
    %1242 = vmatpush1.bf16.msra.mxu0 %v679
    %1243 = vmatprep.subr.bf16.mxu0 %v696
    %1244 = vmatpush1.bf16.msra.mxu0 %v695
    %1245 = vmatprep.subr.bf16.mxu0 %v712
    %1246 = vmatpush1.bf16.msra.mxu0 %v711
    %1247 = vmatprep.subr.bf16.mxu0 %v728
    %1248 = vmatpush1.bf16.msra.mxu0 %v727
    %1249 = vmatprep.subr.bf16.mxu0 %v744
    %1250 = vmatpush1.bf16.msra.mxu0 %v743
    %1251 = vmatprep.subr.bf16.mxu0 %v760
    %1252 = vmatpush1.bf16.msra.mxu0 %v759
    %1253 = vmatprep.subr.bf16.mxu0 %v776
    %1254 = vmatpush1.bf16.msra.mxu0 %v775
    %1255 = vmatprep.subr.bf16.mxu0 %v792
    %1256 = vmatpush1.bf16.msra.mxu0 %v791
    %1257 = vmatprep.subr.bf16.mxu0 0
    %1258 = vmatpush1.bf16.msra.mxu0 0
    %1259 = vmatprep.subr.bf16.mxu0 0
    %1260 = vmatpush1.bf16.msra.mxu0 0
    %1261 = vmatprep.subr.bf16.mxu0 0
    %1262 = vmatpush1.bf16.msra.mxu0 0
    %1263 = vmatprep.subr.bf16.mxu0 0
    %1264 = vmatpush1.bf16.msra.mxu0 0
    %1265 = vmatprep.subr.bf16.mxu0 0
    %1266 = vmatpush1.bf16.msra.mxu0 0
    %1267 = vmatprep.subr.bf16.mxu0 0
    %1268 = vmatpush1.bf16.msra.mxu0 0
    %1269 = vmatprep.subr.bf16.mxu0 0
    %1270 = vmatpush1.bf16.msra.mxu0 0
    %1271 = vmatprep.subr.bf16.mxu0 0
    %1272 = vmatpush1.bf16.msra.mxu0 0
    %1273 = vmatprep.mubr.bf16.mxu0 0
    %1274 = vmatmul.mubr.bf16.gmra.mrb[0].mxu0 %v279
    %v1275 = vpop.f32.mrb[0].mxu0
    %v1276 = vadd.f32 %v242, %v1275
    %v1277 = vpop.f32.mrb[0].mxu0
    %v1278 = vadd.f32 %v246, %v1277
    %v1279 = vpop.f32.mrb[0].mxu0
    %v1280 = vadd.f32 %v242, %v1279
    %v1281 = vpop.f32.mrb[0].mxu0
    %v1282 = vadd.f32 %v246, %v1281
    %1283 = vmatprep.mubr.bf16.mxu0 0
    %1284 = vmatmul.mubr.bf16.gmra.mrb[0].mxu0 %v280
    %v1285 = vpop.f32.mrb[0].mxu0
    %v1286 = vadd.f32 %v242, %v1285
    %v1287 = vpop.f32.mrb[0].mxu0
    %v1288 = vadd.f32 %v246, %v1287
    %v1289 = vpop.f32.mrb[0].mxu0
    %v1290 = vadd.f32 %v242, %v1289
    %v1291 = vpop.f32.mrb[0].mxu0
    %v1292 = vadd.f32 %v246, %v1291
    %1293 = vdwg.mxu0
    %1294 = vmatprep.subr.bf16.mxu0 %v682
    %1295 = vmatpush1.bf16.msra.mxu0 %v681
    %1296 = vmatprep.subr.bf16.mxu0 %v698
    %1297 = vmatpush1.bf16.msra.mxu0 %v697
    %1298 = vmatprep.subr.bf16.mxu0 %v714
    %1299 = vmatpush1.bf16.msra.mxu0 %v713
    %1300 = vmatprep.subr.bf16.mxu0 %v730
    %1301 = vmatpush1.bf16.msra.mxu0 %v729
    %1302 = vmatprep.subr.bf16.mxu0 %v746
    %1303 = vmatpush1.bf16.msra.mxu0 %v745
    %1304 = vmatprep.subr.bf16.mxu0 %v762
    %1305 = vmatpush1.bf16.msra.mxu0 %v761
    %1306 = vmatprep.subr.bf16.mxu0 %v778
    %1307 = vmatpush1.bf16.msra.mxu0 %v777
    %1308 = vmatprep.subr.bf16.mxu0 %v794
    %1309 = vmatpush1.bf16.msra.mxu0 %v793
    %1310 = vmatprep.subr.bf16.mxu0 0
    %1311 = vmatpush1.bf16.msra.mxu0 0
    %1312 = vmatprep.subr.bf16.mxu0 0
    %1313 = vmatpush1.bf16.msra.mxu0 0
    %1314 = vmatprep.subr.bf16.mxu0 0
    %1315 = vmatpush1.bf16.msra.mxu0 0
    %1316 = vmatprep.subr.bf16.mxu0 0
    %1317 = vmatpush1.bf16.msra.mxu0 0
    %1318 = vmatprep.subr.bf16.mxu0 0
    %1319 = vmatpush1.bf16.msra.mxu0 0
    %1320 = vmatprep.subr.bf16.mxu0 0
    %1321 = vmatpush1.bf16.msra.mxu0 0
    %1322 = vmatprep.subr.bf16.mxu0 0
    %1323 = vmatpush1.bf16.msra.mxu0 0
    %1324 = vmatprep.subr.bf16.mxu0 0
    %1325 = vmatpush1.bf16.msra.mxu0 0
    %1326 = vmatprep.mubr.bf16.mxu0 0
    %1327 = vmatmul.mubr.bf16.gmra.mrb[0].mxu0 %v279
    %v1328 = vpop.f32.mrb[0].mxu0
    %v1329 = vadd.f32 %v250, %v1328
    %v1330 = vpop.f32.mrb[0].mxu0
    %v1331 = vadd.f32 %v254, %v1330
    %v1332 = vpop.f32.mrb[0].mxu0
    %v1333 = vadd.f32 %v250, %v1332
    %v1334 = vpop.f32.mrb[0].mxu0
    %v1335 = vadd.f32 %v254, %v1334
    %1336 = vmatprep.mubr.bf16.mxu0 0
    %1337 = vmatmul.mubr.bf16.gmra.mrb[0].mxu0 %v280
    %v1338 = vpop.f32.mrb[0].mxu0
    %v1339 = vadd.f32 %v250, %v1338
    %v1340 = vpop.f32.mrb[0].mxu0
    %v1341 = vadd.f32 %v254, %v1340
    %v1342 = vpop.f32.mrb[0].mxu0
    %v1343 = vadd.f32 %v250, %v1342
    %v1344 = vpop.f32.mrb[0].mxu0
    %v1345 = vadd.f32 %v254, %v1344
    %1346 = vdwg.mxu0
    %1347 = vst [vmem:[#allocation8] sm:$0xff] %v958
    %1348 = vst [vmem:[#allocation8 + $0x8] sm:$0xff] %v960
    %1349 = vst [vmem:[#allocation8 + $0x10] sm:$0xff] %v1011
    %1350 = vst [vmem:[#allocation8 + $0x18] sm:$0xff] %v1013
    %1351 = vst [vmem:[#allocation8 + $0x20] sm:$0xff] %v1064
    %1352 = vst [vmem:[#allocation8 + $0x28] sm:$0xff] %v1066
    %1353 = vst [vmem:[#allocation8 + $0x30] sm:$0xff] %v1117
    %1354 = vst [vmem:[#allocation8 + $0x38] sm:$0xff] %v1119
    %1355 = vst [vmem:[#allocation8 + $0x40] sm:$0xff] %v1170
    %1356 = vst [vmem:[#allocation8 + $0x48] sm:$0xff] %v1172
    %1357 = vst [vmem:[#allocation8 + $0x50] sm:$0xff] %v1223
    %1358 = vst [vmem:[#allocation8 + $0x58] sm:$0xff] %v1225
    %1359 = vst [vmem:[#allocation8 + $0x60] sm:$0xff] %v1276
    %1360 = vst [vmem:[#allocation8 + $0x68] sm:$0xff] %v1278
    %1361 = vst [vmem:[#allocation8 + $0x70] sm:$0xff] %v1329
    %1362 = vst [vmem:[#allocation8 + $0x78] sm:$0xff] %v1331
    %1363 = vst [vmem:[#allocation8 + $0x80] sm:$0xff] %v962
    %1364 = vst [vmem:[#allocation8 + $0x88] sm:$0xff] %v964
    %1365 = vst [vmem:[#allocation8 + $0x90] sm:$0xff] %v1015
    %1366 = vst [vmem:[#allocation8 + $0x98] sm:$0xff] %v1017
    %1367 = vst [vmem:[#allocation8 + $0xa0] sm:$0xff] %v1068
    %1368 = vst [vmem:[#allocation8 + $0xa8] sm:$0xff] %v1070
    %1369 = vst [vmem:[#allocation8 + $0xb0] sm:$0xff] %v1121
    %1370 = vst [vmem:[#allocation8 + $0xb8] sm:$0xff] %v1123
    %1371 = vst [vmem:[#allocation8 + $0xc0] sm:$0xff] %v1174
    %1372 = vst [vmem:[#allocation8 + $0xc8] sm:$0xff] %v1176
    %1373 = vst [vmem:[#allocation8 + $0xd0] sm:$0xff] %v1227
    %1374 = vst [vmem:[#allocation8 + $0xd8] sm:$0xff] %v1229
    %1375 = vst [vmem:[#allocation8 + $0xe0] sm:$0xff] %v1280
    %1376 = vst [vmem:[#allocation8 + $0xe8] sm:$0xff] %v1282
    %1377 = vst [vmem:[#allocation8 + $0xf0] sm:$0xff] %v1333
    %1378 = vst [vmem:[#allocation8 + $0xf8] sm:$0xff] %v1335
    %1379 = vst [vmem:[#allocation8 + $0x100] sm:$0xff] %v968
    %1380 = vst [vmem:[#allocation8 + $0x108] sm:$0xff] %v970
    %1381 = vst [vmem:[#allocation8 + $0x110] sm:$0xff] %v1021
    %1382 = vst [vmem:[#allocation8 + $0x118] sm:$0xff] %v1023
    %1383 = vst [vmem:[#allocation8 + $0x120] sm:$0xff] %v1074
    %1384 = vst [vmem:[#allocation8 + $0x128] sm:$0xff] %v1076
    %1385 = vst [vmem:[#allocation8 + $0x130] sm:$0xff] %v1127
    %1386 = vst [vmem:[#allocation8 + $0x138] sm:$0xff] %v1129
    %1387 = vst [vmem:[#allocation8 + $0x140] sm:$0xff] %v1180
    %1388 = vst [vmem:[#allocation8 + $0x148] sm:$0xff] %v1182
    %1389 = vst [vmem:[#allocation8 + $0x150] sm:$0xff] %v1233
    %1390 = vst [vmem:[#allocation8 + $0x158] sm:$0xff] %v1235
    %1391 = vst [vmem:[#allocation8 + $0x160] sm:$0xff] %v1286
    %1392 = vst [vmem:[#allocation8 + $0x168] sm:$0xff] %v1288
    %1393 = vst [vmem:[#allocation8 + $0x170] sm:$0xff] %v1339
    %1394 = vst [vmem:[#allocation8 + $0x178] sm:$0xff] %v1341
    %1395 = vst [vmem:[#allocation8 + $0x180] sm:$0xff] %v972
    %1396 = vst [vmem:[#allocation8 + $0x188] sm:$0xff] %v974
    %1397 = vst [vmem:[#allocation8 + $0x190] sm:$0xff] %v1025
    %1398 = vst [vmem:[#allocation8 + $0x198] sm:$0xff] %v1027
    %1399 = vst [vmem:[#allocation8 + $0x1a0] sm:$0xff] %v1078
    %1400 = vst [vmem:[#allocation8 + $0x1a8] sm:$0xff] %v1080
    %1401 = vst [vmem:[#allocation8 + $0x1b0] sm:$0xff] %v1131
    %1402 = vst [vmem:[#allocation8 + $0x1b8] sm:$0xff] %v1133
    %1403 = vst [vmem:[#allocation8 + $0x1c0] sm:$0xff] %v1184
    %1404 = vst [vmem:[#allocation8 + $0x1c8] sm:$0xff] %v1186
    %1405 = vst [vmem:[#allocation8 + $0x1d0] sm:$0xff] %v1237
    %1406 = vst [vmem:[#allocation8 + $0x1d8] sm:$0xff] %v1239
    %1407 = vst [vmem:[#allocation8 + $0x1e0] sm:$0xff] %v1290
    %1408 = vst [vmem:[#allocation8 + $0x1e8] sm:$0xff] %v1292
    %1409 = vst [vmem:[#allocation8 + $0x1f0] sm:$0xff] %v1343
    %1410 = vst [vmem:[#allocation8 + $0x1f8] sm:$0xff] %v1345
    // Predicated region
    $region26: #{tpu_custom_call.1} parent=1 // pred_check
      _
    $region27: #{tpu_custom_call.1} parent=1 // pred_check_branch
      %1412 = sbr.rel (0) target = $region29
    $region28: #{tpu_custom_call.1} parent=1 // pred_region
      %s1414 = ssub.s32 8192, 8192
      %1415 = vsyncadd [#allocation4], %s1414
      %s1416 = sshll.u32 [#allocation8], 4
      %s1417 = int_to_ptr.vmem [resolvable:$true] %s1416
      %1422 = dma.vmem_to_hbm [thread:$0]  %s1417, 8192, %s3, [#allocation4], 2048, 2048, 128
    $region29: #{tpu_custom_call.1} parent=1 // pred_fallthru
      _
    // Predicated region
    $region30: #{tpu_custom_call.1} parent=1 // pred_check
      _
    $region31: #{tpu_custom_call.1} parent=1 // pred_check_branch
      %1424 = sbr.rel (0) target = $region33
    $region32: #{tpu_custom_call.1} parent=1 // pred_region
      %1425 = dma.done [#allocation4], 8192
    $region33: #{tpu_custom_call.1} parent=1 // pred_fallthru
      _
    %1426 = vsyncpa [#allocation3], 1
    %1427 = vsyncpa [#allocation6], 1
    %1428 = vsyncpa [#allocation4], 1

</llo_original>
